<compile_context>
chip_gen: v7x
topology: tpu7x:2x2x1
jax: 0.10.0
libtpu: 0.0.40
codegen_flags: <defaults>
</compile_context>

<pallas_src>
import functools

import jax
import jax.numpy as jnp
from jax.experimental import pallas as pl
from jax.experimental.pallas import tpu as pltpu


HIDDEN_DIM = 32
IN_DIM = 2
OUT_DIM = 2
LANE = 128      # lane-dense padded output width
BLOCK_B = 128   # batch rows per grid step


def _mlp_kernel(x_ref, w1_ref, b1_ref, w2_ref, b2_ref, w3p_ref, b3p_ref, o_ref):
    x = x_ref[...]                                              # (BLOCK_B, 2)
    # Layer 1 as a VPU outer product (avoids an MXU round trip for K=2):
    #   x @ W1 = x[:,0:1]*W1[0,:] + x[:,1:2]*W1[1,:]
    h = x[:, 0:1] * w1_ref[0:1, :] + x[:, 1:2] * w1_ref[1:2, :] + b1_ref[...]
    h = jnp.tanh(h)                                             # (BLOCK_B, H)
    # Layer 2: (BLOCK_B, H) @ (H, H) on the MXU.
    h = jnp.dot(h, w2_ref[...], preferred_element_type=jnp.float32)
    h = jnp.tanh(h + b2_ref[...])
    # Layer 3: lane-dense padded output (BLOCK_B, 128); columns >= 2 are zero.
    out = jnp.dot(h, w3p_ref[...], preferred_element_type=jnp.float32)
    o_ref[...] = (out + b3p_ref[...]).astype(o_ref.dtype)


@jax.jit
def vanderpol_ode_func(t, state, params):
    """Pallas equivalent of VanDerPolODEFunc.forward(t, state). `t` unused."""
    del t
    w1, b1, w2, b2, w3, b3 = params
    batch = state.shape[0]
    hidden = w1.shape[1]

    # Zero-pad the last layer to a lane-dense 128-wide output (identical math;
    # extra columns are all zero and dropped below).
    w3p = jnp.zeros((hidden, LANE), w3.dtype).at[:, :OUT_DIM].set(w3)
    b3p = jnp.zeros((1, LANE), b3.dtype).at[:, :OUT_DIM].set(b3)

    # Pad batch to a multiple of BLOCK_B so we can grid over batch tiles.
    padded_b = ((batch + BLOCK_B - 1) // BLOCK_B) * BLOCK_B
    x = state
    if padded_b != batch:
        x = jnp.pad(state, ((0, padded_b - batch), (0, 0)))
    n_tiles = padded_b // BLOCK_B

    # Constant index_map -> weight/bias blocks stay resident in VMEM across
    # all grid iterations (fetched once).
    const = lambda shape: pl.BlockSpec(shape, lambda i: (0, 0))

    out = pl.pallas_call(
        _mlp_kernel,
        out_shape=jax.ShapeDtypeStruct((padded_b, LANE), state.dtype),
        grid=(n_tiles,),
        in_specs=[
            pl.BlockSpec((BLOCK_B, IN_DIM), lambda i: (i, 0)),
            const(w1.shape), const(b1.shape),
            const(w2.shape), const(b2.shape),
            const((hidden, LANE)), const((1, LANE)),
        ],
        out_specs=pl.BlockSpec((BLOCK_B, LANE), lambda i: (i, 0)),
        compiler_params=pltpu.CompilerParams(
            dimension_semantics=("parallel",)),  # shards tiles on v7x's 2 TCs
    )(x, w1, b1, w2, b2, w3p, b3p)

    return out[:batch, :OUT_DIM]


def init_params(key, hidden_dim=HIDDEN_DIM):
    """Deterministic init mimicking torch.nn.Linear (uniform +/- 1/sqrt(fan_in)).

    Weights stored (in, out); biases stored (1, out) so the kernel computes
    x @ W + b (== torch's x @ W.T + b with W stored (out, in)).
    """
    def linear(key, fan_in, fan_out):
        kw, kb = jax.random.split(key)
        bound = 1.0 / jnp.sqrt(float(fan_in))
        w = jax.random.uniform(kw, (fan_in, fan_out), jnp.float32, -bound, bound)
        b = jax.random.uniform(kb, (1, fan_out), jnp.float32, -bound, bound)
        return w, b

    k1, k2, k3 = jax.random.split(key, 3)
    w1, b1 = linear(k1, IN_DIM, hidden_dim)
    w2, b2 = linear(k2, hidden_dim, hidden_dim)
    w3, b3 = linear(k3, hidden_dim, OUT_DIM)
    return (w1, b1, w2, b2, w3, b3)


def _reference(state, params):
    w1, b1, w2, b2, w3, b3 = params
    h = jnp.tanh(state @ w1 + b1)
    h = jnp.tanh(h @ w2 + b2)
    return h @ w3 + b3


if __name__ == "__main__":
    key = jax.random.PRNGKey(0)
    k_params, k_state1, k_state2 = jax.random.split(key, 3)

    params = init_params(k_params)
    t = jnp.float32(0.0)  # unused, matches torch signature

    # Case 1: batch of states spanning multiple grid tiles (weights stay
    # VMEM-resident across tiles; tiles shard across TCs on v7x).
    batch = 256
    state = jax.random.normal(k_state1, (batch, IN_DIM), jnp.float32)
    out = jax.block_until_ready(vanderpol_ode_func(t, state, params))
    ref = _reference(state, params)
    assert out.shape == (batch, OUT_DIM)
    assert jnp.allclose(out, ref, atol=1e-5, rtol=1e-5), "mismatch vs reference (batch=256)"

    # Case 2: tiny batch (exercises the batch-padding path).
    small = jax.random.normal(k_state2, (8, IN_DIM), jnp.float32)
    out_small = jax.block_until_ready(vanderpol_ode_func(t, small, params))
    ref_small = _reference(small, params)
    assert out_small.shape == (8, OUT_DIM)
    assert jnp.allclose(out_small, ref_small, atol=1e-5, rtol=1e-5), "mismatch vs reference (batch=8)"

    # TODO(synk): for a full Neural-ODE solver, fuse the RK integrator loop
    # into the kernel body (lax.fori_loop with weights in VMEM scratch) to
    # also amortize launches across solver steps, not just across the batch.
    print("KERNEL_OK")
</pallas_src>

<mosaic_0001>
module attributes {stable_mosaic.version = 11 : i64} {
  func.func @_mlp_kernel(%arg0: i32, %arg1: memref<128x2xf32, #tpu.memory_space<vmem>>, %arg2: memref<2x32xf32, #tpu.memory_space<vmem>>, %arg3: memref<1x32xf32, #tpu.memory_space<vmem>>, %arg4: memref<32x32xf32, #tpu.memory_space<vmem>>, %arg5: memref<1x32xf32, #tpu.memory_space<vmem>>, %arg6: memref<32x128xf32, #tpu.memory_space<vmem>>, %arg7: memref<1x128xf32, #tpu.memory_space<vmem>>, %arg8: memref<128x128xf32, #tpu.memory_space<vmem>>) attributes {dimension_semantics = [#tpu.dimension_semantics<parallel>], iteration_bounds = array<i64: 2>, scalar_prefetch = 0 : i64, scratch_operands = 0 : i64, tpu.core_type = #tpu.core_type<tc>, window_params = [{transform_indices = @transform_0, window_bounds = array<i64: 128, 2>}, {pipeline_mode = #tpu.pipeline_mode<synchronous>, transform_indices = @transform_1, window_bounds = array<i64: 2, 32>}, {pipeline_mode = #tpu.pipeline_mode<synchronous>, transform_indices = @transform_2, window_bounds = array<i64: 1, 32>}, {pipeline_mode = #tpu.pipeline_mode<synchronous>, transform_indices = @transform_3, window_bounds = array<i64: 32, 32>}, {pipeline_mode = #tpu.pipeline_mode<synchronous>, transform_indices = @transform_4, window_bounds = array<i64: 1, 32>}, {pipeline_mode = #tpu.pipeline_mode<synchronous>, transform_indices = @transform_5, window_bounds = array<i64: 32, 128>}, {pipeline_mode = #tpu.pipeline_mode<synchronous>, transform_indices = @transform_6, window_bounds = array<i64: 1, 128>}, {transform_indices = @transform_7, window_bounds = array<i64: 128, 128>}]} {
    %c0 = arith.constant 0 : index
    %c0_0 = arith.constant 0 : index
    %0 = vector.load %arg1[%c0, %c0_0] : memref<128x2xf32, #tpu.memory_space<vmem>>, vector<128x2xf32>
    %1 = vector.extract_strided_slice %0 {offsets = [0, 0], sizes = [128, 1], strides = [1, 1]} : vector<128x2xf32> to vector<128x1xf32>
    %c0_1 = arith.constant 0 : index
    %c0_2 = arith.constant 0 : index
    %2 = vector.load %arg2[%c0_1, %c0_2] : memref<2x32xf32, #tpu.memory_space<vmem>>, vector<1x32xf32>
    %3 = vector.broadcast %1 : vector<128x1xf32> to vector<128x32xf32>
    %4 = vector.broadcast %2 : vector<1x32xf32> to vector<128x32xf32>
    %5 = arith.mulf %3, %4 : vector<128x32xf32>
    %6 = vector.extract_strided_slice %0 {offsets = [0, 1], sizes = [128, 1], strides = [1, 1]} : vector<128x2xf32> to vector<128x1xf32>
    %c1 = arith.constant 1 : index
    %c0_3 = arith.constant 0 : index
    %7 = vector.load %arg2[%c1, %c0_3] : memref<2x32xf32, #tpu.memory_space<vmem>>, vector<1x32xf32>
    %8 = vector.broadcast %6 : vector<128x1xf32> to vector<128x32xf32>
    %9 = vector.broadcast %7 : vector<1x32xf32> to vector<128x32xf32>
    %10 = arith.mulf %8, %9 : vector<128x32xf32>
    %11 = arith.addf %5, %10 : vector<128x32xf32>
    %c0_4 = arith.constant 0 : index
    %c0_5 = arith.constant 0 : index
    %12 = vector.load %arg3[%c0_4, %c0_5] : memref<1x32xf32, #tpu.memory_space<vmem>>, vector<1x32xf32>
    %13 = vector.broadcast %12 : vector<1x32xf32> to vector<128x32xf32>
    %14 = arith.addf %11, %13 : vector<128x32xf32>
    %15 = math.tanh %14 : vector<128x32xf32>
    %c0_6 = arith.constant 0 : index
    %c0_7 = arith.constant 0 : index
    %16 = vector.load %arg4[%c0_6, %c0_7] : memref<32x32xf32, #tpu.memory_space<vmem>>, vector<32x32xf32>
    %cst = arith.constant dense<0.000000e+00> : vector<128x32xf32>
    %17 = tpu.matmul %15, %16, %cst {dimension_numbers = #tpu.dot_dimension_numbers<[1], [0], [0], [1], [0, 0, 1, 1], [], []>} : vector<128x32xf32>, vector<32x32xf32>, vector<128x32xf32> -> vector<128x32xf32>
    %c0_8 = arith.constant 0 : index
    %c0_9 = arith.constant 0 : index
    %18 = vector.load %arg5[%c0_8, %c0_9] : memref<1x32xf32, #tpu.memory_space<vmem>>, vector<1x32xf32>
    %19 = vector.broadcast %18 : vector<1x32xf32> to vector<128x32xf32>
    %20 = arith.addf %17, %19 : vector<128x32xf32>
    %21 = math.tanh %20 : vector<128x32xf32>
    %c0_10 = arith.constant 0 : index
    %c0_11 = arith.constant 0 : index
    %22 = vector.load %arg6[%c0_10, %c0_11] : memref<32x128xf32, #tpu.memory_space<vmem>>, vector<32x128xf32>
    %cst_12 = arith.constant dense<0.000000e+00> : vector<128x128xf32>
    %23 = tpu.matmul %21, %22, %cst_12 {dimension_numbers = #tpu.dot_dimension_numbers<[1], [0], [0], [1], [0, 0, 1, 1], [], []>} : vector<128x32xf32>, vector<32x128xf32>, vector<128x128xf32> -> vector<128x128xf32>
    %c0_13 = arith.constant 0 : index
    %c0_14 = arith.constant 0 : index
    %24 = vector.load %arg7[%c0_13, %c0_14] : memref<1x128xf32, #tpu.memory_space<vmem>>, vector<1x128xf32>
    %25 = vector.broadcast %24 : vector<1x128xf32> to vector<128x128xf32>
    %26 = arith.addf %23, %25 : vector<128x128xf32>
    %c0_15 = arith.constant 0 : index
    %c0_16 = arith.constant 0 : index
    %27 = vector.load %arg8[%c0_15, %c0_16] : memref<128x128xf32, #tpu.memory_space<vmem>>, vector<128x128xf32>
    tpu.vector_store %arg8[%c0_15, %c0_16], %26 {strides = array<i32>} : memref<128x128xf32, #tpu.memory_space<vmem>>, vector<128x128xf32>,
    return
  }
  func.func @transform_0(%arg0: i32) -> (i32, i32) {
    %c0_i32 = arith.constant 0 : i32
    %c0_i32_0 = arith.constant 0 : i32
    return %arg0, %c0_i32 : i32, i32
  }
  func.func @transform_1(%arg0: i32) -> (i32, i32) {
    %c0_i32 = arith.constant 0 : i32
    %c0_i32_0 = arith.constant 0 : i32
    %c0_i32_1 = arith.constant 0 : i32
    return %c0_i32, %c0_i32_0 : i32, i32
  }
  func.func @transform_2(%arg0: i32) -> (i32, i32) {
    %c0_i32 = arith.constant 0 : i32
    %c0_i32_0 = arith.constant 0 : i32
    %c0_i32_1 = arith.constant 0 : i32
    return %c0_i32, %c0_i32_0 : i32, i32
  }
  func.func @transform_3(%arg0: i32) -> (i32, i32) {
    %c0_i32 = arith.constant 0 : i32
    %c0_i32_0 = arith.constant 0 : i32
    %c0_i32_1 = arith.constant 0 : i32
    return %c0_i32, %c0_i32_0 : i32, i32
  }
  func.func @transform_4(%arg0: i32) -> (i32, i32) {
    %c0_i32 = arith.constant 0 : i32
    %c0_i32_0 = arith.constant 0 : i32
    %c0_i32_1 = arith.constant 0 : i32
    return %c0_i32, %c0_i32_0 : i32, i32
  }
  func.func @transform_5(%arg0: i32) -> (i32, i32) {
    %c0_i32 = arith.constant 0 : i32
    %c0_i32_0 = arith.constant 0 : i32
    %c0_i32_1 = arith.constant 0 : i32
    return %c0_i32, %c0_i32_0 : i32, i32
  }
  func.func @transform_6(%arg0: i32) -> (i32, i32) {
    %c0_i32 = arith.constant 0 : i32
    %c0_i32_0 = arith.constant 0 : i32
    %c0_i32_1 = arith.constant 0 : i32
    return %c0_i32, %c0_i32_0 : i32, i32
  }
  func.func @transform_7(%arg0: i32) -> (i32, i32) {
    %c0_i32 = arith.constant 0 : i32
    %c0_i32_0 = arith.constant 0 : i32
    return %arg0, %c0_i32 : i32, i32
  }
}

</mosaic_0001>

<llo_original>
// kernel: vanderpol_ode_func.1
$region0: #{vanderpol_ode_func.1}
  #allocation0 [shape = 'u32[]', space=smem, size = 0x4, offset = 0x4, fixed_abs, tag = 'smem constant byte address 0x4 - core index']
  #allocation1 [shape = 'u32[144,128]{1,0:T(1,128)}', space=vmem, size = 0x12000, scoped, tag = 'internal scratch']
  %s0 = inlined_call_operand.vmem [shape: f32[256,2], index: 0, kind: input, shape index: {}]
  %s1 = inlined_call_operand.vmem [shape: f32[2,32], index: 1, kind: input, shape index: {}]
  %s2 = inlined_call_operand.vmem [shape: f32[1,32], index: 2, kind: input, shape index: {}]
  %s3 = inlined_call_operand.vmem [shape: f32[32,32], index: 3, kind: input, shape index: {}]
  %s4 = inlined_call_operand.vmem [shape: f32[1,32], index: 4, kind: input, shape index: {}]
  %s5 = inlined_call_operand.vmem [shape: f32[32,128], index: 5, kind: input, shape index: {}]
  %s6 = inlined_call_operand.vmem [shape: f32[1,128], index: 6, kind: input, shape index: {}]
  %s7 = inlined_call_operand.vmem [shape: f32[256,128], index: 7, kind: output, shape index: {}]
  %s8 = sld [smem:[#allocation0]]
  $region61: #{vanderpol_ode_func.1} parent=0
    _
  %s10 = ssub.s32 1, %s8
  %s11 = scalar_select 0, %s10, %s8
  loop: start=0, step=1, limit=4
  $region2: #{vanderpol_ode_func.1} parent=0 // loop_pre_header
    _
  $region3: #{vanderpol_ode_func.1} parent=0 // loop_header
    %s13 = sphi 0, %s17
    %p14 = scmp.ge.s32.totalorder %s13, 4
    %s23 = sphi 0, %s25
    %s26 = sphi 0, %s23
    %s27 = sphi 0, %s26
    %s43 = sphi 0, %s27
    %s47 = sphi 0, %s47
    %s49 = sphi 0, %s47
    %s50 = sphi 0, %s49
    %s64 = sphi 0, %s50
    %s68 = sphi 0, %s68
    %s70 = sphi 0, %s68
    %s71 = sphi 0, %s70
    %s85 = sphi 0, %s71
    %s89 = sphi 0, %s89
    %s91 = sphi 0, %s89
    %s92 = sphi 0, %s91
    %s106 = sphi 0, %s92
    %s110 = sphi 0, %s110
    %s112 = sphi 0, %s110
    %s113 = sphi 0, %s112
    %s127 = sphi 0, %s113
    %s131 = sphi 0, %s131
    %s133 = sphi 0, %s131
    %s134 = sphi 0, %s133
    %s148 = sphi 0, %s134
    %s152 = sphi 0, %s152
    %s154 = sphi 0, %s152
    %s155 = sphi 0, %s154
    %s169 = sphi 0, %s155
    %s175 = sphi 0, %s177
    %s178 = sphi 0, %s175
    %s179 = sphi 0, %s178
    %s195 = sphi 0, %s179
  $region4: #{vanderpol_ode_func.1} parent=0 // loop_header_branch
    %16 = sbr.rel (%p14) target = $region8
  $region5: #{vanderpol_ode_func.1} parent=0 // loop_body
    %s18 = ssub.s32 %s13, 1
    %s19 = ssub.s32 %s13, 2
    %s20 = sadd.s32 %s13, 1
    %s21 = ssub.s32 %s13, %s20
    %p22 = scmp.eq.s32.totalorder %s21, 0
    %s24 = sadd.s32 %s23, 1
    %s25 = scalar_select %p22, %s23, %s24
    %p28 = pneg %p22
    %p29 = scmp.eq.s32.totalorder %s13, 1
    %p30 = por %p28, %p29
    %p31 = scmp.ne.s32.totalorder %s23, %s26
    %p32 = scmp.eq.s32.totalorder %s13, 0
    %p33 = por %p31, %p32
    %p34 = scmp.ne.s32.totalorder %s23, %s26
    %p35 = scmp.eq.s32.totalorder %s18, 1
    %p36 = por %p34, %p35
    %p37 = scmp.ne.s32.totalorder %s26, %s27
    %p38 = scmp.eq.s32.totalorder %s18, 0
    %p39 = por %p37, %p38
    %p40 = scmp.ne.s32.totalorder %s26, %s27
    %p41 = scmp.eq.s32.totalorder %s19, 1
    %p42 = por %p40, %p41
    %p44 = scmp.ne.s32.totalorder %s27, %s43
    %p45 = scmp.eq.s32.totalorder %s19, 0
    %p46 = por %p44, %p45
    %s48 = sadd.s32 %s47, 1
    %p51 = scmp.eq.s32.totalorder %s13, 1
    %p52 = scmp.ne.s32.totalorder %s47, %s49
    %p53 = scmp.eq.s32.totalorder %s13, 0
    %p54 = por %p52, %p53
    %p55 = scmp.ne.s32.totalorder %s47, %s49
    %p56 = scmp.eq.s32.totalorder %s18, 1
    %p57 = por %p55, %p56
    %p58 = scmp.ne.s32.totalorder %s49, %s50
    %p59 = scmp.eq.s32.totalorder %s18, 0
    %p60 = por %p58, %p59
    %p61 = scmp.ne.s32.totalorder %s49, %s50
    %p62 = scmp.eq.s32.totalorder %s19, 1
    %p63 = por %p61, %p62
    %p65 = scmp.ne.s32.totalorder %s50, %s64
    %p66 = scmp.eq.s32.totalorder %s19, 0
    %p67 = por %p65, %p66
    %s69 = sadd.s32 %s68, 1
    %p72 = scmp.eq.s32.totalorder %s13, 1
    %p73 = scmp.ne.s32.totalorder %s68, %s70
    %p74 = scmp.eq.s32.totalorder %s13, 0
    %p75 = por %p73, %p74
    %p76 = scmp.ne.s32.totalorder %s68, %s70
    %p77 = scmp.eq.s32.totalorder %s18, 1
    %p78 = por %p76, %p77
    %p79 = scmp.ne.s32.totalorder %s70, %s71
    %p80 = scmp.eq.s32.totalorder %s18, 0
    %p81 = por %p79, %p80
    %p82 = scmp.ne.s32.totalorder %s70, %s71
    %p83 = scmp.eq.s32.totalorder %s19, 1
    %p84 = por %p82, %p83
    %p86 = scmp.ne.s32.totalorder %s71, %s85
    %p87 = scmp.eq.s32.totalorder %s19, 0
    %p88 = por %p86, %p87
    %s90 = sadd.s32 %s89, 1
    %p93 = scmp.eq.s32.totalorder %s13, 1
    %p94 = scmp.ne.s32.totalorder %s89, %s91
    %p95 = scmp.eq.s32.totalorder %s13, 0
    %p96 = por %p94, %p95
    %p97 = scmp.ne.s32.totalorder %s89, %s91
    %p98 = scmp.eq.s32.totalorder %s18, 1
    %p99 = por %p97, %p98
    %p100 = scmp.ne.s32.totalorder %s91, %s92
    %p101 = scmp.eq.s32.totalorder %s18, 0
    %p102 = por %p100, %p101
    %p103 = scmp.ne.s32.totalorder %s91, %s92
    %p104 = scmp.eq.s32.totalorder %s19, 1
    %p105 = por %p103, %p104
    %p107 = scmp.ne.s32.totalorder %s92, %s106
    %p108 = scmp.eq.s32.totalorder %s19, 0
    %p109 = por %p107, %p108
    %s111 = sadd.s32 %s110, 1
    %p114 = scmp.eq.s32.totalorder %s13, 1
    %p115 = scmp.ne.s32.totalorder %s110, %s112
    %p116 = scmp.eq.s32.totalorder %s13, 0
    %p117 = por %p115, %p116
    %p118 = scmp.ne.s32.totalorder %s110, %s112
    %p119 = scmp.eq.s32.totalorder %s18, 1
    %p120 = por %p118, %p119
    %p121 = scmp.ne.s32.totalorder %s112, %s113
    %p122 = scmp.eq.s32.totalorder %s18, 0
    %p123 = por %p121, %p122
    %p124 = scmp.ne.s32.totalorder %s112, %s113
    %p125 = scmp.eq.s32.totalorder %s19, 1
    %p126 = por %p124, %p125
    %p128 = scmp.ne.s32.totalorder %s113, %s127
    %p129 = scmp.eq.s32.totalorder %s19, 0
    %p130 = por %p128, %p129
    %s132 = sadd.s32 %s131, 1
    %p135 = scmp.eq.s32.totalorder %s13, 1
    %p136 = scmp.ne.s32.totalorder %s131, %s133
    %p137 = scmp.eq.s32.totalorder %s13, 0
    %p138 = por %p136, %p137
    %p139 = scmp.ne.s32.totalorder %s131, %s133
    %p140 = scmp.eq.s32.totalorder %s18, 1
    %p141 = por %p139, %p140
    %p142 = scmp.ne.s32.totalorder %s133, %s134
    %p143 = scmp.eq.s32.totalorder %s18, 0
    %p144 = por %p142, %p143
    %p145 = scmp.ne.s32.totalorder %s133, %s134
    %p146 = scmp.eq.s32.totalorder %s19, 1
    %p147 = por %p145, %p146
    %p149 = scmp.ne.s32.totalorder %s134, %s148
    %p150 = scmp.eq.s32.totalorder %s19, 0
    %p151 = por %p149, %p150
    %s153 = sadd.s32 %s152, 1
    %p156 = scmp.eq.s32.totalorder %s13, 1
    %p157 = scmp.ne.s32.totalorder %s152, %s154
    %p158 = scmp.eq.s32.totalorder %s13, 0
    %p159 = por %p157, %p158
    %p160 = scmp.ne.s32.totalorder %s152, %s154
    %p161 = scmp.eq.s32.totalorder %s18, 1
    %p162 = por %p160, %p161
    %p163 = scmp.ne.s32.totalorder %s154, %s155
    %p164 = scmp.eq.s32.totalorder %s18, 0
    %p165 = por %p163, %p164
    %p166 = scmp.ne.s32.totalorder %s154, %s155
    %p167 = scmp.eq.s32.totalorder %s19, 1
    %p168 = por %p166, %p167
    %p170 = scmp.ne.s32.totalorder %s155, %s169
    %p171 = scmp.eq.s32.totalorder %s19, 0
    %p172 = por %p170, %p171
    %s173 = ssub.s32 %s13, %s20
    %p174 = scmp.eq.s32.totalorder %s173, 0
    %s176 = sadd.s32 %s175, 1
    %s177 = scalar_select %p174, %s175, %s176
    %p180 = pneg %p174
    %p181 = scmp.eq.s32.totalorder %s13, 1
    %p182 = por %p180, %p181
    %p183 = scmp.ne.s32.totalorder %s175, %s178
    %p184 = scmp.eq.s32.totalorder %s13, 0
    %p185 = por %p183, %p184
    %p186 = scmp.ne.s32.totalorder %s175, %s178
    %p187 = scmp.eq.s32.totalorder %s18, 1
    %p188 = por %p186, %p187
    %p189 = scmp.ne.s32.totalorder %s178, %s179
    %p190 = scmp.eq.s32.totalorder %s18, 0
    %p191 = por %p189, %p190
    %p192 = scmp.ne.s32.totalorder %s178, %s179
    %p193 = scmp.eq.s32.totalorder %s19, 1
    %p194 = por %p192, %p193
    %p196 = scmp.ne.s32.totalorder %s179, %s195
    %p197 = scmp.eq.s32.totalorder %s19, 0
    %p198 = por %p196, %p197
    %p199 = scmp.le.s32.totalorder 1, %s13
    %p200 = scmp.lt.s32.totalorder %s13, 3
    %p201 = pnand %p199, %p200
    %p202 = pneg %p201
    // Predicated region
    $region9: #{vanderpol_ode_func.1} parent=5 // pred_check
      _
    $region10: #{vanderpol_ode_func.1} parent=5 // pred_check_branch
      %204 = sbr.rel (%p201) target = $region12
    $region11: #{vanderpol_ode_func.1} parent=5 // pred_region
      %s205 = ssub.s32 %s13, 1
      // Predicated region
      $region13: #{vanderpol_ode_func.1} parent=11 // pred_check
        %p206 = pneg %p60
      $region14: #{vanderpol_ode_func.1} parent=11 // pred_check_branch
        %208 = sbr.rel (%p206) target = $region16
      $region15: #{vanderpol_ode_func.1} parent=11 // pred_region
        _
      $region16: #{vanderpol_ode_func.1} parent=11 // pred_fallthru
        _
      // Predicated region
      $region17: #{vanderpol_ode_func.1} parent=11 // pred_check
        %p209 = pneg %p81
      $region18: #{vanderpol_ode_func.1} parent=11 // pred_check_branch
        %211 = sbr.rel (%p209) target = $region20
      $region19: #{vanderpol_ode_func.1} parent=11 // pred_region
        _
      $region20: #{vanderpol_ode_func.1} parent=11 // pred_fallthru
        _
      // Predicated region
      $region21: #{vanderpol_ode_func.1} parent=11 // pred_check
        %p212 = pneg %p102
      $region22: #{vanderpol_ode_func.1} parent=11 // pred_check_branch
        %214 = sbr.rel (%p212) target = $region24
      $region23: #{vanderpol_ode_func.1} parent=11 // pred_region
        _
      $region24: #{vanderpol_ode_func.1} parent=11 // pred_fallthru
        _
      // Predicated region
      $region25: #{vanderpol_ode_func.1} parent=11 // pred_check
        %p215 = pneg %p123
      $region26: #{vanderpol_ode_func.1} parent=11 // pred_check_branch
        %217 = sbr.rel (%p215) target = $region28
      $region27: #{vanderpol_ode_func.1} parent=11 // pred_region
        _
      $region28: #{vanderpol_ode_func.1} parent=11 // pred_fallthru
        _
      // Predicated region
      $region29: #{vanderpol_ode_func.1} parent=11 // pred_check
        %p218 = pneg %p144
      $region30: #{vanderpol_ode_func.1} parent=11 // pred_check_branch
        %220 = sbr.rel (%p218) target = $region32
      $region31: #{vanderpol_ode_func.1} parent=11 // pred_region
        _
      $region32: #{vanderpol_ode_func.1} parent=11 // pred_fallthru
        _
      // Predicated region
      $region33: #{vanderpol_ode_func.1} parent=11 // pred_check
        %p221 = pneg %p165
      $region34: #{vanderpol_ode_func.1} parent=11 // pred_check_branch
        %223 = sbr.rel (%p221) target = $region36
      $region35: #{vanderpol_ode_func.1} parent=11 // pred_region
        _
      $region36: #{vanderpol_ode_func.1} parent=11 // pred_fallthru
        _
    $region12: #{vanderpol_ode_func.1} parent=5 // pred_fallthru
      _
    %p224 = scmp.lt.s32.totalorder %s13, 2
    // Predicated region
    $region37: #{vanderpol_ode_func.1} parent=5 // pred_check
      %p225 = pneg %p224
    $region38: #{vanderpol_ode_func.1} parent=5 // pred_check_branch
      %227 = sbr.rel (%p225) target = $region40
    $region39: #{vanderpol_ode_func.1} parent=5 // pred_region
      // Predicated region
      $region41: #{vanderpol_ode_func.1} parent=39 // pred_check
        %p228 = pneg %p33
      $region42: #{vanderpol_ode_func.1} parent=39 // pred_check_branch
        %230 = sbr.rel (%p228) target = $region44
      $region43: #{vanderpol_ode_func.1} parent=39 // pred_region
        %s231 = smul.u32 16, %s13
        %p232 = scmp.lt.s32.totalorder %s231, 31
        %s233 = scalar_select %p232, %s231, 31
        %s234 = smul.addr %s233, 8
        %s235 = scalar_lea.vmem %s0, %s234
        %s236 = smul.u32 16, %s13
      $region44: #{vanderpol_ode_func.1} parent=39 // pred_fallthru
        _
    $region40: #{vanderpol_ode_func.1} parent=5 // pred_fallthru
      _
    %p237 = scmp.le.s32.totalorder 1, %s13
    %p238 = scmp.lt.s32.totalorder %s13, 3
    %p239 = pnand %p237, %p238
    %p240 = pneg %p239
    // Predicated region
    $region45: #{vanderpol_ode_func.1} parent=5 // pred_check
      _
    $region46: #{vanderpol_ode_func.1} parent=5 // pred_check_branch
      %242 = sbr.rel (%p239) target = $region48
    $region47: #{vanderpol_ode_func.1} parent=5 // pred_region
      %s243 = ssub.s32 %s13, 1
      %s244 = smul.u32 16, %s18
      %p245 = scmp.lt.s32.totalorder %s244, 31
      %s246 = scalar_select %p245, %s244, 31
      %s247 = smul.addr %s246, 8
      %s248 = scalar_lea.vmem %s0, %s247
      %p249 = pneg %p39
      %p250 = pneg %p36
      %p251 = pneg %p60
      %p252 = pneg %p57
      %p253 = pneg %p81
      %p254 = pneg %p78
      %p255 = pneg %p102
      %p256 = pneg %p99
      %p257 = pneg %p123
      %p258 = pneg %p120
      %p259 = pneg %p144
      %p260 = pneg %p141
      %p261 = pneg %p165
      %p262 = pneg %p162
      %p263 = pneg %p191
      %p264 = pneg %p188
      %s265 = smul.u32 16, %s18
      %p266 = scmp.lt.s32.totalorder %s265, 31
      %s267 = scalar_select %p266, %s265, 31
      %s268 = smul.addr %s267, 8
      %s269 = scalar_lea.vmem %s7, %s268
      %s270 = smul.u32 16, %s18
      %p271 = scmp.lt.s32.totalorder %s270, 31
      %s272 = scalar_select %p271, %s270, 31
      %s273 = smul.addr %s272, 8
      %s274 = scalar_lea.vmem %s0, %s273
      %s275 = smul.u32 16, %s18
      %s276 = smul.u32 16, %s18
      %p277 = scmp.lt.s32.totalorder %s276, 31
      %s278 = scalar_select %p277, %s276, 31
      %s279 = smul.addr %s278, 8
      %s280 = scalar_lea.vmem %s7, %s279
      %s281 = smul.u32 16, %s18
      %v282 = vld [vmem:[%s274] sm:$0xff]
      %v283 = vld [vmem:[%s274 + $0x8] sm:$0xff]
      %v284 = vld [vmem:[%s274 + $0x10] sm:$0xff]
      %v285 = vld [vmem:[%s274 + $0x18] sm:$0xff]
      %v286 = vld [vmem:[%s274 + $0x20] sm:$0xff]
      %v287 = vld [vmem:[%s274 + $0x28] sm:$0xff]
      %v288 = vld [vmem:[%s274 + $0x30] sm:$0xff]
      %v289 = vld [vmem:[%s274 + $0x38] sm:$0xff]
      %v290 = vld [vmem:[%s274 + $0x40] sm:$0xff]
      %v291 = vld [vmem:[%s274 + $0x48] sm:$0xff]
      %v292 = vld [vmem:[%s274 + $0x50] sm:$0xff]
      %v293 = vld [vmem:[%s274 + $0x58] sm:$0xff]
      %v294 = vld [vmem:[%s274 + $0x60] sm:$0xff]
      %v295 = vld [vmem:[%s274 + $0x68] sm:$0xff]
      %v296 = vld [vmem:[%s274 + $0x70] sm:$0xff]
      %v297 = vld [vmem:[%s274 + $0x78] sm:$0xff]
      %v298 = vld [vmem:[%s1] sm:$0x1]
      %300 = vset.pattern.permute.xlu0 0
      %301 = vperm.xlu0 %300, %v282
      %v302 = vpop.permute.xlu0 %301
      %305 = vset.pattern.permute.xlu0 0
      %306 = vperm.xlu0 %305, %v283
      %v307 = vpop.permute.xlu0 %306
      %310 = vset.pattern.permute.xlu0 0
      %311 = vperm.xlu0 %310, %v284
      %v312 = vpop.permute.xlu0 %311
      %315 = vset.pattern.permute.xlu0 0
      %316 = vperm.xlu0 %315, %v285
      %v317 = vpop.permute.xlu0 %316
      %320 = vset.pattern.permute.xlu0 0
      %321 = vperm.xlu0 %320, %v286
      %v322 = vpop.permute.xlu0 %321
      %325 = vset.pattern.permute.xlu0 0
      %326 = vperm.xlu0 %325, %v287
      %v327 = vpop.permute.xlu0 %326
      %330 = vset.pattern.permute.xlu0 0
      %331 = vperm.xlu0 %330, %v288
      %v332 = vpop.permute.xlu0 %331
      %335 = vset.pattern.permute.xlu0 0
      %336 = vperm.xlu0 %335, %v289
      %v337 = vpop.permute.xlu0 %336
      %340 = vset.pattern.permute.xlu0 0
      %341 = vperm.xlu0 %340, %v290
      %v342 = vpop.permute.xlu0 %341
      %345 = vset.pattern.permute.xlu0 0
      %346 = vperm.xlu0 %345, %v291
      %v347 = vpop.permute.xlu0 %346
      %350 = vset.pattern.permute.xlu0 0
      %351 = vperm.xlu0 %350, %v292
      %v352 = vpop.permute.xlu0 %351
      %355 = vset.pattern.permute.xlu0 0
      %356 = vperm.xlu0 %355, %v293
      %v357 = vpop.permute.xlu0 %356
      %360 = vset.pattern.permute.xlu0 0
      %361 = vperm.xlu0 %360, %v294
      %v362 = vpop.permute.xlu0 %361
      %365 = vset.pattern.permute.xlu0 0
      %366 = vperm.xlu0 %365, %v295
      %v367 = vpop.permute.xlu0 %366
      %370 = vset.pattern.permute.xlu0 0
      %371 = vperm.xlu0 %370, %v296
      %v372 = vpop.permute.xlu0 %371
      %375 = vset.pattern.permute.xlu0 0
      %376 = vperm.xlu0 %375, %v297
      %v377 = vpop.permute.xlu0 %376
      %v379 = vlaneseq
      %v380 = vshrl.u32 %v379, 7
      %v381 = vsub.s32 0, %v380
      %v382 = vrot.slane %v298, %v381
      %v383 = vmul.f32 %v302, %v382
      %v384 = vmul.f32 %v307, %v382
      %v385 = vmul.f32 %v312, %v382
      %v386 = vmul.f32 %v317, %v382
      %v387 = vmul.f32 %v322, %v382
      %v388 = vmul.f32 %v327, %v382
      %v389 = vmul.f32 %v332, %v382
      %v390 = vmul.f32 %v337, %v382
      %v391 = vmul.f32 %v342, %v382
      %v392 = vmul.f32 %v347, %v382
      %v393 = vmul.f32 %v352, %v382
      %v394 = vmul.f32 %v357, %v382
      %v395 = vmul.f32 %v362, %v382
      %v396 = vmul.f32 %v367, %v382
      %v397 = vmul.f32 %v372, %v382
      %v398 = vmul.f32 %v377, %v382
      %v399 = vld [vmem:[%s1 + $0x1] sm:$0x1]
      %400 = vset.pattern.permute.xlu0 1
      %401 = vperm.xlu0 %400, %v282
      %v402 = vpop.permute.xlu0 %401
      %404 = vset.pattern.permute.xlu0 1
      %405 = vperm.xlu0 %404, %v283
      %v406 = vpop.permute.xlu0 %405
      %408 = vset.pattern.permute.xlu0 1
      %409 = vperm.xlu0 %408, %v284
      %v410 = vpop.permute.xlu0 %409
      %412 = vset.pattern.permute.xlu0 1
      %413 = vperm.xlu0 %412, %v285
      %v414 = vpop.permute.xlu0 %413
      %416 = vset.pattern.permute.xlu0 1
      %417 = vperm.xlu0 %416, %v286
      %v418 = vpop.permute.xlu0 %417
      %420 = vset.pattern.permute.xlu0 1
      %421 = vperm.xlu0 %420, %v287
      %v422 = vpop.permute.xlu0 %421
      %424 = vset.pattern.permute.xlu0 1
      %425 = vperm.xlu0 %424, %v288
      %v426 = vpop.permute.xlu0 %425
      %428 = vset.pattern.permute.xlu0 1
      %429 = vperm.xlu0 %428, %v289
      %v430 = vpop.permute.xlu0 %429
      %432 = vset.pattern.permute.xlu0 1
      %433 = vperm.xlu0 %432, %v290
      %v434 = vpop.permute.xlu0 %433
      %436 = vset.pattern.permute.xlu0 1
      %437 = vperm.xlu0 %436, %v291
      %v438 = vpop.permute.xlu0 %437
      %440 = vset.pattern.permute.xlu0 1
      %441 = vperm.xlu0 %440, %v292
      %v442 = vpop.permute.xlu0 %441
      %444 = vset.pattern.permute.xlu0 1
      %445 = vperm.xlu0 %444, %v293
      %v446 = vpop.permute.xlu0 %445
      %448 = vset.pattern.permute.xlu0 1
      %449 = vperm.xlu0 %448, %v294
      %v450 = vpop.permute.xlu0 %449
      %452 = vset.pattern.permute.xlu0 1
      %453 = vperm.xlu0 %452, %v295
      %v454 = vpop.permute.xlu0 %453
      %456 = vset.pattern.permute.xlu0 1
      %457 = vperm.xlu0 %456, %v296
      %v458 = vpop.permute.xlu0 %457
      %460 = vset.pattern.permute.xlu0 1
      %461 = vperm.xlu0 %460, %v297
      %v462 = vpop.permute.xlu0 %461
      %v464 = vlaneseq
      %v465 = vshrl.u32 %v464, 7
      %v466 = vsub.s32 0, %v465
      %v467 = vrot.slane %v399, %v466
      %v468 = vmul.f32 %v402, %v467
      %v469 = vmul.f32 %v406, %v467
      %v470 = vmul.f32 %v410, %v467
      %v471 = vmul.f32 %v414, %v467
      %v472 = vmul.f32 %v418, %v467
      %v473 = vmul.f32 %v422, %v467
      %v474 = vmul.f32 %v426, %v467
      %v475 = vmul.f32 %v430, %v467
      %v476 = vmul.f32 %v434, %v467
      %v477 = vmul.f32 %v438, %v467
      %v478 = vmul.f32 %v442, %v467
      %v479 = vmul.f32 %v446, %v467
      %v480 = vmul.f32 %v450, %v467
      %v481 = vmul.f32 %v454, %v467
      %v482 = vmul.f32 %v458, %v467
      %v483 = vmul.f32 %v462, %v467
      %v484 = vadd.f32 %v383, %v468
      %v485 = vadd.f32 %v384, %v469
      %v486 = vadd.f32 %v385, %v470
      %v487 = vadd.f32 %v386, %v471
      %v488 = vadd.f32 %v387, %v472
      %v489 = vadd.f32 %v388, %v473
      %v490 = vadd.f32 %v389, %v474
      %v491 = vadd.f32 %v390, %v475
      %v492 = vadd.f32 %v391, %v476
      %v493 = vadd.f32 %v392, %v477
      %v494 = vadd.f32 %v393, %v478
      %v495 = vadd.f32 %v394, %v479
      %v496 = vadd.f32 %v395, %v480
      %v497 = vadd.f32 %v396, %v481
      %v498 = vadd.f32 %v397, %v482
      %v499 = vadd.f32 %v398, %v483
      %v500 = vld [vmem:[%s2] sm:$0x1]
      %v502 = vlaneseq
      %v503 = vshrl.u32 %v502, 7
      %v504 = vsub.s32 0, %v503
      %v505 = vrot.slane %v500, %v504
      %v507 = vadd.f32 %v484, %v505
      %v508 = vadd.f32 %v485, %v505
      %v509 = vadd.f32 %v486, %v505
      %v510 = vadd.f32 %v487, %v505
      %v511 = vadd.f32 %v488, %v505
      %v512 = vadd.f32 %v489, %v505
      %v513 = vadd.f32 %v490, %v505
      %v514 = vadd.f32 %v491, %v505
      %v515 = vadd.f32 %v492, %v505
      %v516 = vadd.f32 %v493, %v505
      %v517 = vadd.f32 %v494, %v505
      %v518 = vadd.f32 %v495, %v505
      %v519 = vadd.f32 %v496, %v505
      %v520 = vadd.f32 %v497, %v505
      %v521 = vadd.f32 %v498, %v505
      %v522 = vadd.f32 %v499, %v505
      %v523 = vtanh.pop %v507
      %v524 = vtanh.pop %v508
      %v525 = vtanh.pop %v509
      %v526 = vtanh.pop %v510
      %v527 = vtanh.pop %v511
      %v528 = vtanh.pop %v512
      %v529 = vtanh.pop %v513
      %v530 = vtanh.pop %v514
      %v531 = vtanh.pop %v515
      %v532 = vtanh.pop %v516
      %v533 = vtanh.pop %v517
      %v534 = vtanh.pop %v518
      %v535 = vtanh.pop %v519
      %v536 = vtanh.pop %v520
      %v537 = vtanh.pop %v521
      %v538 = vtanh.pop %v522
      %v539 = vld [vmem:[%s3] sm:$0xff]
      %v540 = vld [vmem:[%s3 + $0x8] sm:$0xff]
      %v541 = vld [vmem:[%s3 + $0x10] sm:$0xff]
      %v542 = vld [vmem:[%s3 + $0x18] sm:$0xff]
      %v543 = vld [vmem:[%s4] sm:$0x1]
      %v545 = vlaneseq
      %v546 = vshrl.u32 %v545, 7
      %v547 = vsub.s32 0, %v546
      %v548 = vrot.slane %v543, %v547
      %vm550 = vcmask 261120
      %v552 = vsel %vm550, %v523, 0
      %v555 = vsel %vm550, %v524, 0
      %v558 = vsel %vm550, %v525, 0
      %v561 = vsel %vm550, %v526, 0
      %v564 = vsel %vm550, %v527, 0
      %v567 = vsel %vm550, %v528, 0
      %v570 = vsel %vm550, %v529, 0
      %v573 = vsel %vm550, %v530, 0
      %v576 = vsel %vm550, %v531, 0
      %v579 = vsel %vm550, %v532, 0
      %v582 = vsel %vm550, %v533, 0
      %v585 = vsel %vm550, %v534, 0
      %v588 = vsel %vm550, %v535, 0
      %v591 = vsel %vm550, %v536, 0
      %v594 = vsel %vm550, %v537, 0
      %v597 = vsel %vm550, %v538, 0
      %599 = vmatprep.subr.mxu0 0.0
      %600 = vmatpush1.msra.mxu0 %v539
      %601 = vmatprep.subr.mxu0 0.0
      %602 = vmatpush1.msra.mxu0 %v540
      %603 = vmatprep.subr.mxu0 0.0
      %604 = vmatpush1.msra.mxu0 %v541
      %605 = vmatprep.subr.mxu0 0.0
      %606 = vmatpush1.msra.mxu0 %v542
      %607 = vmatprep.subr.mxu0 0.0
      %608 = vmatpush1.msra.mxu0 0.0
      %609 = vmatprep.subr.mxu0 0.0
      %610 = vmatpush1.msra.mxu0 0.0
      %611 = vmatprep.subr.mxu0 0.0
      %612 = vmatpush1.msra.mxu0 0.0
      %613 = vmatprep.subr.mxu0 0.0
      %614 = vmatpush1.msra.mxu0 0.0
      %615 = vmatprep.subr.mxu0 0.0
      %616 = vmatpush1.msra.mxu0 0.0
      %617 = vmatprep.subr.mxu0 0.0
      %618 = vmatpush1.msra.mxu0 0.0
      %619 = vmatprep.subr.mxu0 0.0
      %620 = vmatpush1.msra.mxu0 0.0
      %621 = vmatprep.subr.mxu0 0.0
      %622 = vmatpush1.msra.mxu0 0.0
      %623 = vmatprep.subr.mxu0 0.0
      %624 = vmatpush1.msra.mxu0 0.0
      %625 = vmatprep.subr.mxu0 0.0
      %626 = vmatpush1.msra.mxu0 0.0
      %627 = vmatprep.subr.mxu0 0.0
      %628 = vmatpush1.msra.mxu0 0.0
      %629 = vmatprep.subr.mxu0 0.0
      %630 = vmatpush1.msra.mxu0 0.0
      %631 = vmatprep.subr.mxu0 0.0
      %632 = vmatpush1.msra.mxu0 0.0
      %633 = vmatprep.subr.mxu0 0.0
      %634 = vmatpush1.msra.mxu0 0.0
      %635 = vmatprep.subr.mxu0 0.0
      %636 = vmatpush1.msra.mxu0 0.0
      %637 = vmatprep.subr.mxu0 0.0
      %638 = vmatpush1.msra.mxu0 0.0
      %639 = vmatprep.subr.mxu0 0.0
      %640 = vmatpush1.msra.mxu0 0.0
      %641 = vmatprep.subr.mxu0 0.0
      %642 = vmatpush1.msra.mxu0 0.0
      %643 = vmatprep.subr.mxu0 0.0
      %644 = vmatpush1.msra.mxu0 0.0
      %645 = vmatprep.subr.mxu0 0.0
      %646 = vmatpush1.msra.mxu0 0.0
      %647 = vmatprep.subr.mxu0 0.0
      %648 = vmatpush1.msra.mxu0 0.0
      %649 = vmatprep.subr.mxu0 0.0
      %650 = vmatpush1.msra.mxu0 0.0
      %651 = vmatprep.subr.mxu0 0.0
      %652 = vmatpush1.msra.mxu0 0.0
      %653 = vmatprep.subr.mxu0 0.0
      %654 = vmatpush1.msra.mxu0 0.0
      %655 = vmatprep.subr.mxu0 0.0
      %656 = vmatpush1.msra.mxu0 0.0
      %657 = vmatprep.subr.mxu0 0.0
      %658 = vmatpush1.msra.mxu0 0.0
      %659 = vmatprep.subr.mxu0 0.0
      %660 = vmatpush1.msra.mxu0 0.0
      %661 = vmatprep.subr.mxu0 0.0
      %662 = vmatpush1.msra.mxu0 0.0
      %663 = vmatprep.mubr.f32.mxu0 0.0
      %664 = vmatmul.mubr.f32.gmra.mrb[0].mxu0 %v552
      %v665 = vpop.f32.mrb[0].mxu0
      %v666 = vadd.f32 %v548, %v665
      %v667 = vpop.f32.mrb[0].mxu0
      %668 = vmatprep.mubr.f32.mxu0 0.0
      %669 = vmatmul.mubr.f32.gmra.mrb[0].mxu0 %v555
      %v670 = vpop.f32.mrb[0].mxu0
      %v671 = vadd.f32 %v548, %v670
      %v672 = vpop.f32.mrb[0].mxu0
      %673 = vmatprep.mubr.f32.mxu0 0.0
      %674 = vmatmul.mubr.f32.gmra.mrb[0].mxu0 %v558
      %v675 = vpop.f32.mrb[0].mxu0
      %v676 = vadd.f32 %v548, %v675
      %v677 = vpop.f32.mrb[0].mxu0
      %678 = vmatprep.mubr.f32.mxu0 0.0
      %679 = vmatmul.mubr.f32.gmra.mrb[0].mxu0 %v561
      %v680 = vpop.f32.mrb[0].mxu0
      %v681 = vadd.f32 %v548, %v680
      %v682 = vpop.f32.mrb[0].mxu0
      %683 = vmatprep.mubr.f32.mxu0 0.0
      %684 = vmatmul.mubr.f32.gmra.mrb[0].mxu0 %v564
      %v685 = vpop.f32.mrb[0].mxu0
      %v686 = vadd.f32 %v548, %v685
      %v687 = vpop.f32.mrb[0].mxu0
      %688 = vmatprep.mubr.f32.mxu0 0.0
      %689 = vmatmul.mubr.f32.gmra.mrb[0].mxu0 %v567
      %v690 = vpop.f32.mrb[0].mxu0
      %v691 = vadd.f32 %v548, %v690
      %v692 = vpop.f32.mrb[0].mxu0
      %693 = vmatprep.mubr.f32.mxu0 0.0
      %694 = vmatmul.mubr.f32.gmra.mrb[0].mxu0 %v570
      %v695 = vpop.f32.mrb[0].mxu0
      %v696 = vadd.f32 %v548, %v695
      %v697 = vpop.f32.mrb[0].mxu0
      %698 = vmatprep.mubr.f32.mxu0 0.0
      %699 = vmatmul.mubr.f32.gmra.mrb[0].mxu0 %v573
      %v700 = vpop.f32.mrb[0].mxu0
      %v701 = vadd.f32 %v548, %v700
      %v702 = vpop.f32.mrb[0].mxu0
      %703 = vmatprep.mubr.f32.mxu0 0.0
      %704 = vmatmul.mubr.f32.gmra.mrb[0].mxu0 %v576
      %v705 = vpop.f32.mrb[0].mxu0
      %v706 = vadd.f32 %v548, %v705
      %v707 = vpop.f32.mrb[0].mxu0
      %708 = vmatprep.mubr.f32.mxu0 0.0
      %709 = vmatmul.mubr.f32.gmra.mrb[0].mxu0 %v579
      %v710 = vpop.f32.mrb[0].mxu0
      %v711 = vadd.f32 %v548, %v710
      %v712 = vpop.f32.mrb[0].mxu0
      %713 = vmatprep.mubr.f32.mxu0 0.0
      %714 = vmatmul.mubr.f32.gmra.mrb[0].mxu0 %v582
      %v715 = vpop.f32.mrb[0].mxu0
      %v716 = vadd.f32 %v548, %v715
      %v717 = vpop.f32.mrb[0].mxu0
      %718 = vmatprep.mubr.f32.mxu0 0.0
      %719 = vmatmul.mubr.f32.gmra.mrb[0].mxu0 %v585
      %v720 = vpop.f32.mrb[0].mxu0
      %v721 = vadd.f32 %v548, %v720
      %v722 = vpop.f32.mrb[0].mxu0
      %723 = vmatprep.mubr.f32.mxu0 0.0
      %724 = vmatmul.mubr.f32.gmra.mrb[0].mxu0 %v588
      %v725 = vpop.f32.mrb[0].mxu0
      %v726 = vadd.f32 %v548, %v725
      %v727 = vpop.f32.mrb[0].mxu0
      %728 = vmatprep.mubr.f32.mxu0 0.0
      %729 = vmatmul.mubr.f32.gmra.mrb[0].mxu0 %v591
      %v730 = vpop.f32.mrb[0].mxu0
      %v731 = vadd.f32 %v548, %v730
      %v732 = vpop.f32.mrb[0].mxu0
      %733 = vmatprep.mubr.f32.mxu0 0.0
      %734 = vmatmul.mubr.f32.gmra.mrb[0].mxu0 %v594
      %v735 = vpop.f32.mrb[0].mxu0
      %v736 = vadd.f32 %v548, %v735
      %v737 = vpop.f32.mrb[0].mxu0
      %738 = vmatprep.mubr.f32.mxu0 0.0
      %739 = vmatmul.mubr.f32.gmra.mrb[0].mxu0 %v597
      %v740 = vpop.f32.mrb[0].mxu0
      %v741 = vadd.f32 %v548, %v740
      %v742 = vpop.f32.mrb[0].mxu0
      %743 = vdwg.mxu0
      %v744 = vtanh.pop %v666
      %v745 = vtanh.pop %v671
      %v746 = vtanh.pop %v676
      %v747 = vtanh.pop %v681
      %v748 = vtanh.pop %v686
      %v749 = vtanh.pop %v691
      %v750 = vtanh.pop %v696
      %v751 = vtanh.pop %v701
      %v752 = vtanh.pop %v706
      %v753 = vtanh.pop %v711
      %v754 = vtanh.pop %v716
      %v755 = vtanh.pop %v721
      %v756 = vtanh.pop %v726
      %v757 = vtanh.pop %v731
      %v758 = vtanh.pop %v736
      %v759 = vtanh.pop %v741
      %v760 = vld [vmem:[%s5] sm:$0xff]
      %v761 = vld [vmem:[%s5 + $0x8] sm:$0xff]
      %v762 = vld [vmem:[%s5 + $0x10] sm:$0xff]
      %v763 = vld [vmem:[%s5 + $0x18] sm:$0xff]
      %v764 = vld [vmem:[%s6] sm:$0x1]
      %v766 = vlaneseq
      %v767 = vshrl.u32 %v766, 7
      %v768 = vsub.s32 0, %v767
      %v769 = vrot.slane %v764, %v768
      %v772 = vsel %vm550, %v744, 0
      %v775 = vsel %vm550, %v745, 0
      %v778 = vsel %vm550, %v746, 0
      %v781 = vsel %vm550, %v747, 0
      %v784 = vsel %vm550, %v748, 0
      %v787 = vsel %vm550, %v749, 0
      %v790 = vsel %vm550, %v750, 0
      %v793 = vsel %vm550, %v751, 0
      %v796 = vsel %vm550, %v752, 0
      %v799 = vsel %vm550, %v753, 0
      %v802 = vsel %vm550, %v754, 0
      %v805 = vsel %vm550, %v755, 0
      %v808 = vsel %vm550, %v756, 0
      %v811 = vsel %vm550, %v757, 0
      %v814 = vsel %vm550, %v758, 0
      %v817 = vsel %vm550, %v759, 0
      %819 = vmatprep.subr.mxu0 0.0
      %820 = vmatpush1.msra.mxu0 %v760
      %821 = vmatprep.subr.mxu0 0.0
      %822 = vmatpush1.msra.mxu0 %v761
      %823 = vmatprep.subr.mxu0 0.0
      %824 = vmatpush1.msra.mxu0 %v762
      %825 = vmatprep.subr.mxu0 0.0
      %826 = vmatpush1.msra.mxu0 %v763
      %827 = vmatprep.subr.mxu0 0.0
      %828 = vmatpush1.msra.mxu0 0.0
      %829 = vmatprep.subr.mxu0 0.0
      %830 = vmatpush1.msra.mxu0 0.0
      %831 = vmatprep.subr.mxu0 0.0
      %832 = vmatpush1.msra.mxu0 0.0
      %833 = vmatprep.subr.mxu0 0.0
      %834 = vmatpush1.msra.mxu0 0.0
      %835 = vmatprep.subr.mxu0 0.0
      %836 = vmatpush1.msra.mxu0 0.0
      %837 = vmatprep.subr.mxu0 0.0
      %838 = vmatpush1.msra.mxu0 0.0
      %839 = vmatprep.subr.mxu0 0.0
      %840 = vmatpush1.msra.mxu0 0.0
      %841 = vmatprep.subr.mxu0 0.0
      %842 = vmatpush1.msra.mxu0 0.0
      %843 = vmatprep.subr.mxu0 0.0
      %844 = vmatpush1.msra.mxu0 0.0
      %845 = vmatprep.subr.mxu0 0.0
      %846 = vmatpush1.msra.mxu0 0.0
      %847 = vmatprep.subr.mxu0 0.0
      %848 = vmatpush1.msra.mxu0 0.0
      %849 = vmatprep.subr.mxu0 0.0
      %850 = vmatpush1.msra.mxu0 0.0
      %851 = vmatprep.subr.mxu0 0.0
      %852 = vmatpush1.msra.mxu0 0.0
      %853 = vmatprep.subr.mxu0 0.0
      %854 = vmatpush1.msra.mxu0 0.0
      %855 = vmatprep.subr.mxu0 0.0
      %856 = vmatpush1.msra.mxu0 0.0
      %857 = vmatprep.subr.mxu0 0.0
      %858 = vmatpush1.msra.mxu0 0.0
      %859 = vmatprep.subr.mxu0 0.0
      %860 = vmatpush1.msra.mxu0 0.0
      %861 = vmatprep.subr.mxu0 0.0
      %862 = vmatpush1.msra.mxu0 0.0
      %863 = vmatprep.subr.mxu0 0.0
      %864 = vmatpush1.msra.mxu0 0.0
      %865 = vmatprep.subr.mxu0 0.0
      %866 = vmatpush1.msra.mxu0 0.0
      %867 = vmatprep.subr.mxu0 0.0
      %868 = vmatpush1.msra.mxu0 0.0
      %869 = vmatprep.subr.mxu0 0.0
      %870 = vmatpush1.msra.mxu0 0.0
      %871 = vmatprep.subr.mxu0 0.0
      %872 = vmatpush1.msra.mxu0 0.0
      %873 = vmatprep.subr.mxu0 0.0
      %874 = vmatpush1.msra.mxu0 0.0
      %875 = vmatprep.subr.mxu0 0.0
      %876 = vmatpush1.msra.mxu0 0.0
      %877 = vmatprep.subr.mxu0 0.0
      %878 = vmatpush1.msra.mxu0 0.0
      %879 = vmatprep.subr.mxu0 0.0
      %880 = vmatpush1.msra.mxu0 0.0
      %881 = vmatprep.subr.mxu0 0.0
      %882 = vmatpush1.msra.mxu0 0.0
      %883 = vmatprep.mubr.f32.mxu0 0.0
      %884 = vmatmul.mubr.f32.gmra.mrb[0].mxu0 %v772
      %v885 = vpop.f32.mrb[0].mxu0
      %v886 = vadd.f32 %v769, %v885
      %v887 = vpop.f32.mrb[0].mxu0
      %888 = vmatprep.mubr.f32.mxu0 0.0
      %889 = vmatmul.mubr.f32.gmra.mrb[0].mxu0 %v775
      %v890 = vpop.f32.mrb[0].mxu0
      %v891 = vadd.f32 %v769, %v890
      %v892 = vpop.f32.mrb[0].mxu0
      %893 = vmatprep.mubr.f32.mxu0 0.0
      %894 = vmatmul.mubr.f32.gmra.mrb[0].mxu0 %v778
      %v895 = vpop.f32.mrb[0].mxu0
      %v896 = vadd.f32 %v769, %v895
      %v897 = vpop.f32.mrb[0].mxu0
      %898 = vmatprep.mubr.f32.mxu0 0.0
      %899 = vmatmul.mubr.f32.gmra.mrb[0].mxu0 %v781
      %v900 = vpop.f32.mrb[0].mxu0
      %v901 = vadd.f32 %v769, %v900
      %v902 = vpop.f32.mrb[0].mxu0
      %903 = vmatprep.mubr.f32.mxu0 0.0
      %904 = vmatmul.mubr.f32.gmra.mrb[0].mxu0 %v784
      %v905 = vpop.f32.mrb[0].mxu0
      %v906 = vadd.f32 %v769, %v905
      %v907 = vpop.f32.mrb[0].mxu0
      %908 = vmatprep.mubr.f32.mxu0 0.0
      %909 = vmatmul.mubr.f32.gmra.mrb[0].mxu0 %v787
      %v910 = vpop.f32.mrb[0].mxu0
      %v911 = vadd.f32 %v769, %v910
      %v912 = vpop.f32.mrb[0].mxu0
      %913 = vmatprep.mubr.f32.mxu0 0.0
      %914 = vmatmul.mubr.f32.gmra.mrb[0].mxu0 %v790
      %v915 = vpop.f32.mrb[0].mxu0
      %v916 = vadd.f32 %v769, %v915
      %v917 = vpop.f32.mrb[0].mxu0
      %918 = vmatprep.mubr.f32.mxu0 0.0
      %919 = vmatmul.mubr.f32.gmra.mrb[0].mxu0 %v793
      %v920 = vpop.f32.mrb[0].mxu0
      %v921 = vadd.f32 %v769, %v920
      %v922 = vpop.f32.mrb[0].mxu0
      %923 = vmatprep.mubr.f32.mxu0 0.0
      %924 = vmatmul.mubr.f32.gmra.mrb[0].mxu0 %v796
      %v925 = vpop.f32.mrb[0].mxu0
      %v926 = vadd.f32 %v769, %v925
      %v927 = vpop.f32.mrb[0].mxu0
      %928 = vmatprep.mubr.f32.mxu0 0.0
      %929 = vmatmul.mubr.f32.gmra.mrb[0].mxu0 %v799
      %v930 = vpop.f32.mrb[0].mxu0
      %v931 = vadd.f32 %v769, %v930
      %v932 = vpop.f32.mrb[0].mxu0
      %933 = vmatprep.mubr.f32.mxu0 0.0
      %934 = vmatmul.mubr.f32.gmra.mrb[0].mxu0 %v802
      %v935 = vpop.f32.mrb[0].mxu0
      %v936 = vadd.f32 %v769, %v935
      %v937 = vpop.f32.mrb[0].mxu0
      %938 = vmatprep.mubr.f32.mxu0 0.0
      %939 = vmatmul.mubr.f32.gmra.mrb[0].mxu0 %v805
      %v940 = vpop.f32.mrb[0].mxu0
      %v941 = vadd.f32 %v769, %v940
      %v942 = vpop.f32.mrb[0].mxu0
      %943 = vmatprep.mubr.f32.mxu0 0.0
      %944 = vmatmul.mubr.f32.gmra.mrb[0].mxu0 %v808
      %v945 = vpop.f32.mrb[0].mxu0
      %v946 = vadd.f32 %v769, %v945
      %v947 = vpop.f32.mrb[0].mxu0
      %948 = vmatprep.mubr.f32.mxu0 0.0
      %949 = vmatmul.mubr.f32.gmra.mrb[0].mxu0 %v811
      %v950 = vpop.f32.mrb[0].mxu0
      %v951 = vadd.f32 %v769, %v950
      %v952 = vpop.f32.mrb[0].mxu0
      %953 = vmatprep.mubr.f32.mxu0 0.0
      %954 = vmatmul.mubr.f32.gmra.mrb[0].mxu0 %v814
      %v955 = vpop.f32.mrb[0].mxu0
      %v956 = vadd.f32 %v769, %v955
      %v957 = vpop.f32.mrb[0].mxu0
      %958 = vmatprep.mubr.f32.mxu0 0.0
      %959 = vmatmul.mubr.f32.gmra.mrb[0].mxu0 %v817
      %v960 = vpop.f32.mrb[0].mxu0
      %v961 = vadd.f32 %v769, %v960
      %v962 = vpop.f32.mrb[0].mxu0
      %963 = vdwg.mxu0
      %964 = vst [vmem:[%s280] sm:$0xff] %v886
      %965 = vst [vmem:[%s280 + $0x8] sm:$0xff] %v891
      %966 = vst [vmem:[%s280 + $0x10] sm:$0xff] %v896
      %967 = vst [vmem:[%s280 + $0x18] sm:$0xff] %v901
      %968 = vst [vmem:[%s280 + $0x20] sm:$0xff] %v906
      %969 = vst [vmem:[%s280 + $0x28] sm:$0xff] %v911
      %970 = vst [vmem:[%s280 + $0x30] sm:$0xff] %v916
      %971 = vst [vmem:[%s280 + $0x38] sm:$0xff] %v921
      %972 = vst [vmem:[%s280 + $0x40] sm:$0xff] %v926
      %973 = vst [vmem:[%s280 + $0x48] sm:$0xff] %v931
      %974 = vst [vmem:[%s280 + $0x50] sm:$0xff] %v936
      %975 = vst [vmem:[%s280 + $0x58] sm:$0xff] %v941
      %976 = vst [vmem:[%s280 + $0x60] sm:$0xff] %v946
      %977 = vst [vmem:[%s280 + $0x68] sm:$0xff] %v951
      %978 = vst [vmem:[%s280 + $0x70] sm:$0xff] %v956
      %979 = vst [vmem:[%s280 + $0x78] sm:$0xff] %v961
      %s980 = smul.u32 16, %s18
      %p981 = scmp.lt.s32.totalorder %s980, 31
      %s982 = scalar_select %p981, %s980, 31
      %s983 = smul.addr %s982, 8
      %s984 = scalar_lea.vmem %s7, %s983
      // Predicated region
      $region49: #{vanderpol_ode_func.1} parent=47 // pred_check
        %p985 = pneg %p188
      $region50: #{vanderpol_ode_func.1} parent=47 // pred_check_branch
        %987 = sbr.rel (%p985) target = $region52
      $region51: #{vanderpol_ode_func.1} parent=47 // pred_region
        %s988 = smul.u32 16, %s18
      $region52: #{vanderpol_ode_func.1} parent=47 // pred_fallthru
        _
    $region48: #{vanderpol_ode_func.1} parent=5 // pred_fallthru
      _
    %p989 = scmp.le.s32.totalorder 2, %s13
    // Predicated region
    $region53: #{vanderpol_ode_func.1} parent=5 // pred_check
      %p990 = pneg %p989
    $region54: #{vanderpol_ode_func.1} parent=5 // pred_check_branch
      %992 = sbr.rel (%p990) target = $region56
    $region55: #{vanderpol_ode_func.1} parent=5 // pred_region
      %s993 = ssub.s32 %s13, 2
      // Predicated region
      $region57: #{vanderpol_ode_func.1} parent=55 // pred_check
        %p994 = pneg %p194
      $region58: #{vanderpol_ode_func.1} parent=55 // pred_check_branch
        %996 = sbr.rel (%p994) target = $region60
      $region59: #{vanderpol_ode_func.1} parent=55 // pred_region
        %s997 = smul.u32 16, %s19
        %p998 = scmp.lt.s32.totalorder %s997, 31
        %s999 = scalar_select %p998, %s997, 31
        %s1000 = smul.addr %s999, 8
        %s1001 = scalar_lea.vmem %s7, %s1000
      $region60: #{vanderpol_ode_func.1} parent=55 // pred_fallthru
        _
    $region56: #{vanderpol_ode_func.1} parent=5 // pred_fallthru
      _
  $region6: #{vanderpol_ode_func.1} parent=0 // loop_footer
    %s17 = sadd.s32 1, %s13
  $region7: #{vanderpol_ode_func.1} parent=0 // loop_footer_branch
    %12 = sbr.rel target = $region3
  $region8: #{vanderpol_ode_func.1} parent=0 // loop_exit
    _

</llo_original>
